<compile_context>
chip_gen: v6e
topology: v6e:2x2x1
jax: 0.10.0
libtpu: 0.0.40
codegen_flags: <defaults>
</compile_context>

<pallas_src>
import functools

import jax
import jax.numpy as jnp
from jax.experimental import pallas as pl
from jax.experimental.pallas import tpu as pltpu

GAUSSIAN_STEPS = {1: 1.596, 2: 0.996, 3: 0.586, 4: 0.336, 5: 0.188, 32: 0.0}

LANE = 128                                  # vreg lane width (last dim)
MAX_BLOCK_ROWS = 8192                       # 8192*128*4B = 4 MiB f32 block
_BLOCK_CANDIDATES = (8192, 4096, 2048, 1024, 512, 256, 128, 64, 32, 16, 8)
FUSED_MAX_ELEMS = 1 << 20                   # single-pass path for <= 1M elements
VMEM_LIMIT_BYTES = 48 * 1024 * 1024         # explicit scoped-VMEM limit (safe on v5e/v6e/v7x)


def _smem_spec():
    return pl.BlockSpec(memory_space=pltpu.MemorySpace.SMEM)


def _sublane_for(dtype):
    return {4: 8, 2: 16, 1: 32}.get(jnp.dtype(dtype).itemsize, 8)


def _layout(n_elem, sublane):
    """(rows, block_rows, clean) for the flattened (rows, 128) view.  Never pads."""
    rows_exact = n_elem // LANE
    clean = (rows_exact * LANE == n_elem) and rows_exact > 0 and (rows_exact % sublane == 0)
    rows = rows_exact if clean else (rows_exact // sublane) * sublane
    if rows == 0:
        return 0, 0, False
    block = sublane
    for b in _BLOCK_CANDIDATES:
        if b % sublane == 0 and rows % b == 0:
            block = b
            break
    # TODO(synk): for very awkward row counts (largest divisor tiny) split into a
    # big-block prefix + small remainder call to amortize per-step overhead.
    return rows, block, clean


# ---------------------------------------------------------------------------
# Kernel A (fused single pass): stats + per-bit quantization + mixing, whole
# tensor resident in VMEM.  x is read from HBM once and written once.
# ---------------------------------------------------------------------------
def _fused_kernel(nbits, n_elem, steps_ref, mask_ref, lo_ref, hi_ref, x_ref, o_ref):
    xf = x_ref[...].astype(jnp.float32)

    s = jnp.sum(xf)
    sq = jnp.sum(xf * xf)
    n = jnp.float32(n_elem)
    mean = s / n
    var = (sq - n * mean * mean) / (n - 1.0)
    alpha = jnp.sqrt(jnp.maximum(var, 0.0))

    acc = None
    bias = jnp.float32(0.0)
    for i in range(nbits):                      # nbits tiny & static -> unrolled
        step = steps_ref[i] * alpha
        inv = 1.0 / step
        coef = step * mask_ref[i]
        bias = bias + 0.5 * coef
        t = jnp.clip(jnp.round(xf * inv + 0.5), lo_ref[i], hi_ref[i])
        c = t * coef
        acc = c if acc is None else acc + c
    o_ref[...] = (acc - bias).astype(o_ref.dtype)


def _fused_call(x2d, steps, mask, lo, hi, nbits, n_elem):
    rows = x2d.shape[0]
    kernel = functools.partial(_fused_kernel, nbits, n_elem)
    nbytes = x2d.size * x2d.dtype.itemsize
    return pl.pallas_call(
        kernel,
        out_shape=jax.ShapeDtypeStruct(x2d.shape, x2d.dtype),
        grid_spec=pltpu.PrefetchScalarGridSpec(
            num_scalar_prefetch=0,
            grid=(1,),
            in_specs=[
                _smem_spec(),                                  # gaussian steps
                _smem_spec(),                                  # softmask
                _smem_spec(),                                  # level-space lo clip
                _smem_spec(),                                  # level-space hi clip
                pl.BlockSpec((rows, LANE), lambda i: (0, 0)),  # whole x slab
            ],
            out_specs=pl.BlockSpec((rows, LANE), lambda i: (0, 0)),
        ),
        compiler_params=pltpu.CompilerParams(
            dimension_semantics=("arbitrary",),
            vmem_limit_bytes=VMEM_LIMIT_BYTES),
        cost_estimate=pl.CostEstimate(
            flops=(3 + 7 * nbits) * x2d.size, transcendentals=1,
            bytes_accessed=2 * nbytes),
    )(steps, mask, lo, hi, x2d)


# ---------------------------------------------------------------------------
# Kernel B1 (two-pass path): per-block sum / sum-of-squares partials.
# Each grid step writes its own (1,8,128) partial => grid axis is truly
# "parallel" (megacore shards it on v7x); the KiB-scale finish is plain XLA.
# ---------------------------------------------------------------------------
def _stats_kernel(x_ref, sum_ref, sq_ref):
    xf = x_ref[...].astype(jnp.float32)
    xr = xf.reshape(-1, 8, LANE)              # same layout, split leading dim
    sum_ref[0] = jnp.sum(xr, axis=0)          # VPU adds only (no per-step scalar reduce)
    sq_ref[0] = jnp.sum(xr * xr, axis=0)


def _stats_call(x2d, block_rows):
    rows = x2d.shape[0]
    nblk = rows // block_rows
    nbytes = x2d.size * x2d.dtype.itemsize
    s_p, sq_p = pl.pallas_call(
        _stats_kernel,
        out_shape=(
            jax.ShapeDtypeStruct((nblk, 8, LANE), jnp.float32),
            jax.ShapeDtypeStruct((nblk, 8, LANE), jnp.float32),
        ),
        grid_spec=pltpu.PrefetchScalarGridSpec(
            num_scalar_prefetch=0,
            grid=(nblk,),
            in_specs=[pl.BlockSpec((block_rows, LANE), lambda i: (i, 0))],
            out_specs=[
                pl.BlockSpec((1, 8, LANE), lambda i: (i, 0, 0)),
                pl.BlockSpec((1, 8, LANE), lambda i: (i, 0, 0)),
            ],
        ),
        compiler_params=pltpu.CompilerParams(
            dimension_semantics=("parallel",),
            vmem_limit_bytes=VMEM_LIMIT_BYTES),
        cost_estimate=pl.CostEstimate(
            flops=3 * x2d.size, transcendentals=0,
            bytes_accessed=nbytes + 2 * nblk * 8 * LANE * 4),
    )(x2d)
    return jnp.sum(s_p), jnp.sum(sq_p)


# ---------------------------------------------------------------------------
# Kernel B2 (two-pass path): per-bit quantization + softmask mixing.
# Per bit:  t = clip(round(x*inv + 0.5), lo, hi);  acc += t*coef
# with lo = 1 - 2^bit/2, hi = 2^bit/2 (exact integers), coef = step*mask,
# and a single end-of-kernel bias subtraction acc - 0.5*sum(coef).
# ---------------------------------------------------------------------------
def _quant_mix_kernel(nbits, inv_ref, lo_ref, hi_ref, coef_ref, bias_ref, x_ref, o_ref):
    xf = x_ref[...].astype(jnp.float32)
    # hoist the SMEM scalar reads out of the unrolled per-bit loop (one sld each)
    inv = [inv_ref[i] for i in range(nbits)]
    lo = [lo_ref[i] for i in range(nbits)]
    hi = [hi_ref[i] for i in range(nbits)]
    coef = [coef_ref[i] for i in range(nbits)]

    t = jnp.clip(jnp.round(xf * inv[0] + 0.5), lo[0], hi[0])
    acc = t * coef[0]
    for i in range(1, nbits):                  # nbits tiny & static -> unrolled
        t = jnp.clip(jnp.round(xf * inv[i] + 0.5), lo[i], hi[i])
        acc = acc + t * coef[i]
    o_ref[...] = (acc - bias_ref[0]).astype(o_ref.dtype)


def _quant_call(x2d, inv, lo, hi, coef, bias1, nbits, block_rows):
    rows = x2d.shape[0]
    kernel = functools.partial(_quant_mix_kernel, nbits)
    nbytes = x2d.size * x2d.dtype.itemsize
    return pl.pallas_call(
        kernel,
        out_shape=jax.ShapeDtypeStruct(x2d.shape, x2d.dtype),
        grid_spec=pltpu.PrefetchScalarGridSpec(
            num_scalar_prefetch=0,
            grid=(rows // block_rows,),
            in_specs=[
                _smem_spec(),                                        # 1/step
                _smem_spec(),                                        # lo (level space)
                _smem_spec(),                                        # hi (level space)
                _smem_spec(),                                        # step*mask
                _smem_spec(),                                        # bias (1,)
                pl.BlockSpec((block_rows, LANE), lambda i: (i, 0)),  # x tile
            ],
            out_specs=pl.BlockSpec((block_rows, LANE), lambda i: (i, 0)),
        ),
        compiler_params=pltpu.CompilerParams(
            dimension_semantics=("parallel",),
            vmem_limit_bytes=VMEM_LIMIT_BYTES),
        cost_estimate=pl.CostEstimate(
            flops=7 * nbits * x2d.size, transcendentals=0,
            bytes_accessed=2 * nbytes),
    )(inv, lo, hi, coef, bias1, x2d)


# ---------------------------------------------------------------------------
# jitted forward (everything except the fp32 passthrough).
# ---------------------------------------------------------------------------
def _make_forward(bits_list):
    nbits = len(bits_list)
    bits_const = tuple(float(b) for b in bits_list)
    steps_const = tuple(float(GAUSSIAN_STEPS[int(b)]) for b in bits_list)

    @functools.partial(jax.jit, static_argnames=("fused_max_elems",))
    def forward(theta, x, key, fused_max_elems):
        orig_shape = x.shape
        orig_dtype = x.dtype
        n_elem = x.size

        bits_arr = jnp.array(bits_const, jnp.float32)
        steps_arr = jnp.array(steps_const, jnp.float32)

        # Gumbel-softmax (tau=1, hard=False) -- tiny, plain JAX glue inside the jit.
        gumbels = jax.random.gumbel(key, (nbits,), jnp.float32)
        softmask = jax.nn.softmax(theta.astype(jnp.float32) + gumbels, axis=0)
        act_size = jnp.sum(softmask * bits_arr)

        # clip bounds in (shifted) level space: t in [1 - 2^b/2, 2^b/2], exact integers.
        lvls = 2.0 ** bits_arr / 2.0
        hi = lvls
        lo = 1.0 - lvls

        flat = x.reshape(-1)                          # original dtype stays in HBM
        sublane = _sublane_for(orig_dtype)
        rows, block_rows, clean = _layout(n_elem, sublane)

        # --- fused single-pass path (fits in VMEM, clean lane-dense reshape) ---
        if clean and n_elem <= fused_max_elems:
            x2d = flat.reshape(rows, LANE)
            out2d = _fused_call(x2d, steps_arr, softmask, lo, hi, nbits, n_elem)
            return out2d.reshape(orig_shape), act_size

        # --- two-pass path: stats kernel + quant kernel over the block-aligned
        #     bulk, tiny XLA tail for the ragged remainder (no pad copies) ---
        bulk = rows * LANE
        x2d = flat[:bulk].reshape(rows, LANE) if rows > 0 else None
        tail = flat[bulk:].astype(jnp.float32) if bulk != n_elem else None

        if rows > 0:
            s, sq = _stats_call(x2d, block_rows)
        else:
            s = jnp.float32(0.0)
            sq = jnp.float32(0.0)
        if tail is not None:
            s = s + jnp.sum(tail)
            sq = sq + jnp.sum(tail * tail)

        n = jnp.float32(n_elem)
        mean = s / n
        var = (sq - n * mean * mean) / jnp.maximum(n - 1.0, 1.0)
        alpha = jnp.sqrt(jnp.maximum(var, 0.0))       # x.std(), unbiased

        # NOTE: a mixed bits list containing 32 gives step==0 -> inf/NaN, exactly
        # like the PyTorch reference (x / 0); not guarded here.
        scaled = steps_arr * alpha                    # step_i = g_i * alpha
        inv = 1.0 / scaled                            # divide hoisted out of the kernel
        coef = scaled * softmask                      # fold step_i * softmask_i
        bias = 0.5 * jnp.sum(coef)                    # folded "-0.5" per bit

        pieces = []
        if rows > 0:
            main_out = _quant_call(x2d, inv, lo, hi, coef,
                                   jnp.reshape(bias, (1,)), nbits, block_rows)
            pieces.append(main_out.reshape(-1))
        if tail is not None:
            t = jnp.round(tail[None, :] * inv[:, None] + 0.5)
            t = jnp.clip(t, lo[:, None], hi[:, None])
            tail_out = (jnp.sum(t * coef[:, None], axis=0) - bias).astype(orig_dtype)
            pieces.append(tail_out)

        out_flat = pieces[0] if len(pieces) == 1 else jnp.concatenate(pieces)
        return out_flat.reshape(orig_shape), act_size

    return forward


# ---------------------------------------------------------------------------
# Module wrapper (mirrors Q_Sym.__init__ / initialize / forward).
# ---------------------------------------------------------------------------
class QSymPallas:
    def __init__(self):
        # matches Q_Sym.__init__: bits=[32], theta=[1.]
        self.bits_list = [32]
        self.theta = jnp.array([1.0], jnp.float32)
        self.fused_max_elems = FUSED_MAX_ELEMS
        self._forward = None

    def initialize(self, bits):
        # matches Q_Sym.initialize (deterministic parameter setup).
        self.bits_list = [int(b) for b in bits]
        n = len(self.bits_list)
        self.theta = jnp.ones((n,), jnp.float32) / n
        self._forward = _make_forward(self.bits_list)

    def __call__(self, x, key):
        if len(self.bits_list) == 1 and self.bits_list[0] == 32:
            return x, 32                      # fp32 passthrough
        # TODO(synk): STE backward of _gauss_quantize is not implemented (forward only).
        return self._forward(self.theta, x, key,
                             fused_max_elems=self.fused_max_elems)


if __name__ == "__main__":
    key = jax.random.PRNGKey(0)
    k_x, k_gumbel = jax.random.split(key)

    # small NCHW activation tensor (2048 elems -> clean layout, fused VMEM path)
    x = jax.random.normal(k_x, (2, 4, 16, 16), dtype=jnp.float32)

    module = QSymPallas()
    module.initialize([2, 3, 4])               # mixed-precision search path
    x_bar, act_size = module(x, k_gumbel)
    x_bar = jax.block_until_ready(x_bar)
    act_size = jax.block_until_ready(act_size)
    assert x_bar.shape == x.shape and x_bar.dtype == x.dtype
    assert bool(jnp.all(jnp.isfinite(x_bar)))

    # pure-jnp reference with the same softmask / formula (loose, flip-tolerant check)
    nb = 3
    gum = jax.random.gumbel(k_gumbel, (nb,), jnp.float32)
    softmask = jax.nn.softmax(module.theta + gum, axis=0)
    bits_r = jnp.array([2.0, 3.0, 4.0], jnp.float32)
    steps_r = jnp.array([GAUSSIAN_STEPS[2], GAUSSIAN_STEPS[3], GAUSSIAN_STEPS[4]], jnp.float32)
    alpha_r = jnp.std(x, ddof=1)
    ref = jnp.zeros_like(x)
    for i in range(nb):
        step = steps_r[i] * alpha_r
        y = (jnp.round(x / step + 0.5) - 0.5) * step
        thr = (2.0 ** bits_r[i] / 2.0 - 0.5) * step
        y = jnp.clip(y, -thr, thr)
        ref = ref + y * softmask[i]
    assert float(jnp.mean(jnp.abs(x_bar - ref))) < 5e-3
    assert abs(float(act_size) - float(jnp.sum(softmask * bits_r))) < 1e-4

    # force the tiled two-pass (stats + quant) path on the same small input
    module2 = QSymPallas()
    module2.initialize([2, 3, 4])
    module2.fused_max_elems = 0
    x_bar2, _ = module2(x, k_gumbel)
    x_bar2 = jax.block_until_ready(x_bar2)
    assert float(jnp.mean(jnp.abs(x_bar2 - ref))) < 5e-3

    # ragged size: block-aligned bulk via kernels + tiny XLA tail (1105 elements)
    x_rag = jax.random.normal(jax.random.PRNGKey(1), (5, 13, 17), dtype=jnp.float32)
    xb_r, _ = module(x_rag, k_gumbel)
    xb_r = jax.block_until_ready(xb_r)
    assert xb_r.shape == x_rag.shape and bool(jnp.all(jnp.isfinite(xb_r)))

    # bf16 input: original dtype kept in HBM, per-block cast in-kernel
    x_bf = x.astype(jnp.bfloat16)
    xb_bf, _ = module(x_bf, k_gumbel)
    xb_bf = jax.block_until_ready(xb_bf)
    assert xb_bf.dtype == jnp.bfloat16 and bool(jnp.all(jnp.isfinite(xb_bf.astype(jnp.float32))))

    # fp32 passthrough path
    fp_module = QSymPallas()
    y, bitw = fp_module(x, k_gumbel)
    y = jax.block_until_ready(y)
    assert y.shape == x.shape and bitw == 32

    print("KERNEL_OK")
</pallas_src>

<mosaic_0001>
module attributes {stable_mosaic.version = 11 : i64} {
  func.func @_fused_kernel(%arg0: i32, %arg1: memref<3xf32, #tpu.memory_space<smem>>, %arg2: memref<3xf32, #tpu.memory_space<smem>>, %arg3: memref<3xf32, #tpu.memory_space<smem>>, %arg4: memref<3xf32, #tpu.memory_space<smem>>, %arg5: memref<16x128xf32, #tpu.memory_space<vmem>>, %arg6: memref<16x128xf32, #tpu.memory_space<vmem>>) attributes {dimension_semantics = [#tpu.dimension_semantics<arbitrary>], iteration_bounds = array<i64: 1>, scalar_prefetch = 0 : i64, scratch_operands = 0 : i64, tpu.core_type = #tpu.core_type<tc>, window_params = [{transform_indices = @transform_0, window_bounds = array<i64: 3>}, {transform_indices = @transform_1, window_bounds = array<i64: 3>}, {transform_indices = @transform_2, window_bounds = array<i64: 3>}, {transform_indices = @transform_3, window_bounds = array<i64: 3>}, {pipeline_mode = #tpu.pipeline_mode<synchronous>, transform_indices = @transform_4, window_bounds = array<i64: 16, 128>}, {pipeline_mode = #tpu.pipeline_mode<synchronous>, transform_indices = @transform_5, window_bounds = array<i64: 16, 128>}]} {
    %c0 = arith.constant 0 : index
    %c0_0 = arith.constant 0 : index
    %0 = vector.load %arg5[%c0, %c0_0] : memref<16x128xf32, #tpu.memory_space<vmem>>, vector<16x128xf32>
    %1 = vector.shape_cast %0 : vector<16x128xf32> to vector<1x16x128xf32>
    %cst = arith.constant dense<0.000000e+00> : vector<1xf32>
    %2 = vector.multi_reduction <add>, %1, %cst [1, 2] : vector<1x16x128xf32> to vector<1xf32>
    %3 = vector.shape_cast %2 : vector<1xf32> to vector<1x1x1xf32>
    %4 = vector.extract %3[0, 0, 0] : f32 from vector<1x1x1xf32>
    %5 = arith.mulf %0, %0 : vector<16x128xf32>
    %6 = vector.shape_cast %5 : vector<16x128xf32> to vector<1x16x128xf32>
    %cst_1 = arith.constant dense<0.000000e+00> : vector<1xf32>
    %7 = vector.multi_reduction <add>, %6, %cst_1 [1, 2] : vector<1x16x128xf32> to vector<1xf32>
    %8 = vector.shape_cast %7 : vector<1xf32> to vector<1x1x1xf32>
    %9 = vector.extract %8[0, 0, 0] : f32 from vector<1x1x1xf32>
    %cst_2 = arith.constant 2.048000e+03 : f32
    %10 = arith.divf %4, %cst_2 : f32
    %cst_3 = arith.constant 2.048000e+03 : f32
    %11 = arith.mulf %cst_3, %10 : f32
    %12 = arith.mulf %11, %10 : f32
    %13 = arith.subf %9, %12 : f32
    %cst_4 = arith.constant 2.048000e+03 : f32
    %cst_5 = arith.constant 1.000000e+00 : f32
    %14 = arith.subf %cst_4, %cst_5 : f32
    %15 = arith.divf %13, %14 : f32
    %cst_6 = arith.constant 0.000000e+00 : f32
    %16 = arith.maximumf %15, %cst_6 : f32
    %17 = math.sqrt %16 : f32
    %c0_7 = arith.constant 0 : index
    %18 = memref.load %arg1[%c0_7] : memref<3xf32, #tpu.memory_space<smem>>
    %19 = arith.mulf %18, %17 : f32
    %cst_8 = arith.constant 1.000000e+00 : f32
    %20 = arith.divf %cst_8, %19 : f32
    %c0_9 = arith.constant 0 : index
    %21 = memref.load %arg2[%c0_9] : memref<3xf32, #tpu.memory_space<smem>>
    %22 = arith.mulf %19, %21 : f32
    %cst_10 = arith.constant 5.000000e-01 : f32
    %23 = arith.mulf %cst_10, %22 : f32
    %cst_11 = arith.constant 0.000000e+00 : f32
    %24 = arith.addf %cst_11, %23 : f32
    %25 = vector.broadcast %20 : f32 to vector<16x128xf32>
    %26 = arith.mulf %0, %25 : vector<16x128xf32>
    %cst_12 = arith.constant 5.000000e-01 : f32
    %27 = vector.broadcast %cst_12 : f32 to vector<16x128xf32>
    %28 = arith.addf %26, %27 : vector<16x128xf32>
    %29 = math.roundeven %28 : vector<16x128xf32>
    %c0_13 = arith.constant 0 : index
    %30 = memref.load %arg3[%c0_13] : memref<3xf32, #tpu.memory_space<smem>>
    %c0_14 = arith.constant 0 : index
    %31 = memref.load %arg4[%c0_14] : memref<3xf32, #tpu.memory_space<smem>>
    %32 = vector.broadcast %30 : f32 to vector<16x128xf32>
    %33 = arith.maximumf %32, %29 : vector<16x128xf32>
    %34 = vector.broadcast %31 : f32 to vector<16x128xf32>
    %35 = arith.minimumf %34, %33 : vector<16x128xf32>
    %36 = vector.broadcast %22 : f32 to vector<16x128xf32>
    %37 = arith.mulf %35, %36 : vector<16x128xf32>
    %c1 = arith.constant 1 : index
    %38 = memref.load %arg1[%c1] : memref<3xf32, #tpu.memory_space<smem>>
    %39 = arith.mulf %38, %17 : f32
    %cst_15 = arith.constant 1.000000e+00 : f32
    %40 = arith.divf %cst_15, %39 : f32
    %c1_16 = arith.constant 1 : index
    %41 = memref.load %arg2[%c1_16] : memref<3xf32, #tpu.memory_space<smem>>
    %42 = arith.mulf %39, %41 : f32
    %cst_17 = arith.constant 5.000000e-01 : f32
    %43 = arith.mulf %cst_17, %42 : f32
    %44 = arith.addf %24, %43 : f32
    %45 = vector.broadcast %40 : f32 to vector<16x128xf32>
    %46 = arith.mulf %0, %45 : vector<16x128xf32>
    %cst_18 = arith.constant 5.000000e-01 : f32
    %47 = vector.broadcast %cst_18 : f32 to vector<16x128xf32>
    %48 = arith.addf %46, %47 : vector<16x128xf32>
    %49 = math.roundeven %48 : vector<16x128xf32>
    %c1_19 = arith.constant 1 : index
    %50 = memref.load %arg3[%c1_19] : memref<3xf32, #tpu.memory_space<smem>>
    %c1_20 = arith.constant 1 : index
    %51 = memref.load %arg4[%c1_20] : memref<3xf32, #tpu.memory_space<smem>>
    %52 = vector.broadcast %50 : f32 to vector<16x128xf32>
    %53 = arith.maximumf %52, %49 : vector<16x128xf32>
    %54 = vector.broadcast %51 : f32 to vector<16x128xf32>
    %55 = arith.minimumf %54, %53 : vector<16x128xf32>
    %56 = vector.broadcast %42 : f32 to vector<16x128xf32>
    %57 = arith.mulf %55, %56 : vector<16x128xf32>
    %58 = arith.addf %37, %57 : vector<16x128xf32>
    %c2 = arith.constant 2 : index
    %59 = memref.load %arg1[%c2] : memref<3xf32, #tpu.memory_space<smem>>
    %60 = arith.mulf %59, %17 : f32
    %cst_21 = arith.constant 1.000000e+00 : f32
    %61 = arith.divf %cst_21, %60 : f32
    %c2_22 = arith.constant 2 : index
    %62 = memref.load %arg2[%c2_22] : memref<3xf32, #tpu.memory_space<smem>>
    %63 = arith.mulf %60, %62 : f32
    %cst_23 = arith.constant 5.000000e-01 : f32
    %64 = arith.mulf %cst_23, %63 : f32
    %65 = arith.addf %44, %64 : f32
    %66 = vector.broadcast %61 : f32 to vector<16x128xf32>
    %67 = arith.mulf %0, %66 : vector<16x128xf32>
    %cst_24 = arith.constant 5.000000e-01 : f32
    %68 = vector.broadcast %cst_24 : f32 to vector<16x128xf32>
    %69 = arith.addf %67, %68 : vector<16x128xf32>
    %70 = math.roundeven %69 : vector<16x128xf32>
    %c2_25 = arith.constant 2 : index
    %71 = memref.load %arg3[%c2_25] : memref<3xf32, #tpu.memory_space<smem>>
    %c2_26 = arith.constant 2 : index
    %72 = memref.load %arg4[%c2_26] : memref<3xf32, #tpu.memory_space<smem>>
    %73 = vector.broadcast %71 : f32 to vector<16x128xf32>
    %74 = arith.maximumf %73, %70 : vector<16x128xf32>
    %75 = vector.broadcast %72 : f32 to vector<16x128xf32>
    %76 = arith.minimumf %75, %74 : vector<16x128xf32>
    %77 = vector.broadcast %63 : f32 to vector<16x128xf32>
    %78 = arith.mulf %76, %77 : vector<16x128xf32>
    %79 = arith.addf %58, %78 : vector<16x128xf32>
    %80 = vector.broadcast %65 : f32 to vector<16x128xf32>
    %81 = arith.subf %79, %80 : vector<16x128xf32>
    %c0_27 = arith.constant 0 : index
    %c0_28 = arith.constant 0 : index
    %82 = vector.load %arg6[%c0_27, %c0_28] : memref<16x128xf32, #tpu.memory_space<vmem>>, vector<16x128xf32>
    tpu.vector_store %arg6[%c0_27, %c0_28], %81 {strides = array<i32>} : memref<16x128xf32, #tpu.memory_space<vmem>>, vector<16x128xf32>,
    return
  }
  func.func @transform_0(%arg0: i32) -> i32 {
    %c0_i32 = arith.constant 0 : i32
    %c0_i32_0 = arith.constant 0 : i32
    return %c0_i32 : i32
  }
  func.func @transform_1(%arg0: i32) -> i32 {
    %c0_i32 = arith.constant 0 : i32
    %c0_i32_0 = arith.constant 0 : i32
    return %c0_i32 : i32
  }
  func.func @transform_2(%arg0: i32) -> i32 {
    %c0_i32 = arith.constant 0 : i32
    %c0_i32_0 = arith.constant 0 : i32
    return %c0_i32 : i32
  }
  func.func @transform_3(%arg0: i32) -> i32 {
    %c0_i32 = arith.constant 0 : i32
    %c0_i32_0 = arith.constant 0 : i32
    return %c0_i32 : i32
  }
  func.func @transform_4(%arg0: i32) -> (i32, i32) {
    %c0_i32 = arith.constant 0 : i32
    %c0_i32_0 = arith.constant 0 : i32
    %c0_i32_1 = arith.constant 0 : i32
    return %c0_i32, %c0_i32_0 : i32, i32
  }
  func.func @transform_5(%arg0: i32) -> (i32, i32) {
    %c0_i32 = arith.constant 0 : i32
    %c0_i32_0 = arith.constant 0 : i32
    %c0_i32_1 = arith.constant 0 : i32
    return %c0_i32, %c0_i32_0 : i32, i32
  }
}

</mosaic_0001>

<llo_original>
// kernel: forward.1
$region0: #{forward.1}
  #allocation0 [shape = 'u32[]', space=smem, size = 0x4, offset = 0x4, fixed_abs, tag = 'smem constant byte address 0x4 - core index']
  #allocation1 [shape = 'u32[144,128]{1,0:T(1,128)}', space=vmem, size = 0x12000, scoped, tag = 'internal scratch']
  %s0 = inlined_call_operand.vmem [shape: f32[3], index: 0, kind: input, shape index: {}]
  %s1 = inlined_call_operand.vmem [shape: f32[3], index: 1, kind: input, shape index: {}]
  %s2 = inlined_call_operand.vmem [shape: f32[3], index: 2, kind: input, shape index: {}]
  %s3 = inlined_call_operand.vmem [shape: f32[3], index: 3, kind: input, shape index: {}]
  %s4 = inlined_call_operand.vmem [shape: f32[16,128], index: 4, kind: input, shape index: {}]
  %s5 = inlined_call_operand.vmem [shape: f32[16,128], index: 5, kind: output, shape index: {}]
  %s6 = sld [smem:[#allocation0]]
  $region46: #{forward.1} parent=0
    _
  %s8 = ssub.s32 1, %s6
  %s9 = scalar_select 0, %s8, %s6
  $region1: #{forward.1} parent=0
    #allocation2 [shape = 'u8[512]{0}', space=smem, size = 0x200, scoped, tag = 'input window, operand 0, single buffered']
    #allocation3 [shape = 's32[1]{0}', space=sflag, size = 0x4, scoped, tag = 'scoped memory for forward.1']
    #allocation4 [shape = 'u8[512]{0}', space=smem, size = 0x200, scoped, tag = 'input window, operand 1, single buffered']
    #allocation5 [shape = 's32[1]{0}', space=sflag, size = 0x4, scoped, tag = 'scoped memory for forward.1']
    #allocation6 [shape = 'u8[512]{0}', space=smem, size = 0x200, scoped, tag = 'input window, operand 2, single buffered']
    #allocation7 [shape = 'u8[512]{0}', space=smem, size = 0x200, scoped, tag = 'input window, operand 3, single buffered']
    #allocation8 [shape = 's32[1]{0}', space=sflag, size = 0x4, scoped, tag = 'scoped memory for forward.1']
    %10 = vsyncpa [#allocation3], 0
    %11 = vsyncpa [#allocation5], 0
    %12 = vsyncpa [#allocation8], 0
    // Predicated region
    $region2: #{forward.1} parent=1 // pred_check
      _
    $region3: #{forward.1} parent=1 // pred_check_branch
      %14 = sbr.rel (0) target = $region5
    $region4: #{forward.1} parent=1 // pred_region
      %s16 = ssub.s32 16, 16
      %17 = vsyncadd [#allocation3], %s16
      %s19 = sshll.u32 %s0, 4
      %s20 = int_to_ptr.vmem [resolvable:$true] %s19
      %22 = dma.vmem_to_smem %s20, 16, [#allocation2], [#allocation3]
    $region5: #{forward.1} parent=1 // pred_fallthru
      _
    // Predicated region
    $region6: #{forward.1} parent=1 // pred_check
      _
    $region7: #{forward.1} parent=1 // pred_check_branch
      %24 = sbr.rel (0) target = $region9
    $region8: #{forward.1} parent=1 // pred_region
      %s26 = ssub.s32 16, 16
      %27 = vsyncadd [#allocation5], %s26
      %s29 = sshll.u32 %s1, 4
      %s30 = int_to_ptr.vmem [resolvable:$true] %s29
      %32 = dma.vmem_to_smem %s30, 16, [#allocation4], [#allocation5]
    $region9: #{forward.1} parent=1 // pred_fallthru
      _
    // Predicated region
    $region10: #{forward.1} parent=1 // pred_check
      _
    $region11: #{forward.1} parent=1 // pred_check_branch
      %34 = sbr.rel (0) target = $region13
    $region12: #{forward.1} parent=1 // pred_region
      %s36 = ssub.s32 16, 16
      %37 = vsyncadd [#allocation5], %s36
      %s39 = sshll.u32 %s2, 4
      %s40 = int_to_ptr.vmem [resolvable:$true] %s39
      %42 = dma.vmem_to_smem %s40, 16, [#allocation6], [#allocation5]
    $region13: #{forward.1} parent=1 // pred_fallthru
      _
    // Predicated region
    $region14: #{forward.1} parent=1 // pred_check
      _
    $region15: #{forward.1} parent=1 // pred_check_branch
      %44 = sbr.rel (0) target = $region17
    $region16: #{forward.1} parent=1 // pred_region
      %s46 = ssub.s32 16, 16
      %47 = vsyncadd [#allocation8], %s46
      %s49 = sshll.u32 %s3, 4
      %s50 = int_to_ptr.vmem [resolvable:$true] %s49
      %52 = dma.vmem_to_smem %s50, 16, [#allocation7], [#allocation8]
    $region17: #{forward.1} parent=1 // pred_fallthru
      _
    // Predicated region
    $region18: #{forward.1} parent=1 // pred_check
      _
    $region19: #{forward.1} parent=1 // pred_check_branch
      %54 = sbr.rel (0) target = $region21
    $region20: #{forward.1} parent=1 // pred_region
      _
    $region21: #{forward.1} parent=1 // pred_fallthru
      _
    // Predicated region
    $region22: #{forward.1} parent=1 // pred_check
      _
    $region23: #{forward.1} parent=1 // pred_check_branch
      %56 = sbr.rel (0) target = $region25
    $region24: #{forward.1} parent=1 // pred_region
      %57 = dma.done [#allocation3], 16
    $region25: #{forward.1} parent=1 // pred_fallthru
      _
    // Predicated region
    $region26: #{forward.1} parent=1 // pred_check
      _
    $region27: #{forward.1} parent=1 // pred_check_branch
      %59 = sbr.rel (0) target = $region29
    $region28: #{forward.1} parent=1 // pred_region
      %60 = dma.done [#allocation5], 16
    $region29: #{forward.1} parent=1 // pred_fallthru
      _
    // Predicated region
    $region30: #{forward.1} parent=1 // pred_check
      _
    $region31: #{forward.1} parent=1 // pred_check_branch
      %62 = sbr.rel (0) target = $region33
    $region32: #{forward.1} parent=1 // pred_region
      %63 = dma.done [#allocation5], 16
    $region33: #{forward.1} parent=1 // pred_fallthru
      _
    // Predicated region
    $region34: #{forward.1} parent=1 // pred_check
      _
    $region35: #{forward.1} parent=1 // pred_check_branch
      %65 = sbr.rel (0) target = $region37
    $region36: #{forward.1} parent=1 // pred_region
      %66 = dma.done [#allocation8], 16
    $region37: #{forward.1} parent=1 // pred_fallthru
      _
    %67 = sfence
    %v68 = vld [vmem:[%s4] sm:$0xff]
    %v69 = vld [vmem:[%s4 + $0x8] sm:$0xff]
    %v70 = vadd.f32 %v68, %v69
    %71 = vadd.xlane.f32.xlu0 %v70
    %v72 = vpop.xlane.xlu0 %71
    %v73 = vrot.slane %v72, 4
    %v74 = vadd.f32 %v72, %v73
    %v75 = vrot.slane %v74, 2
    %v76 = vadd.f32 %v74, %v75
    %v77 = vrot.slane %v76, 1
    %v78 = vadd.f32 %v76, %v77
    %s79 = vtos %v78
    %v80 = vmul.f32 %v68, %v68
    %v81 = vmul.f32 %v69, %v69
    %v82 = vadd.f32 %v80, %v81
    %83 = vadd.xlane.f32.xlu0 %v82
    %v84 = vpop.xlane.xlu0 %83
    %v85 = vrot.slane %v84, 4
    %v86 = vadd.f32 %v84, %v85
    %v87 = vrot.slane %v86, 2
    %v88 = vadd.f32 %v86, %v87
    %v89 = vrot.slane %v88, 1
    %v90 = vadd.f32 %v88, %v89
    %s91 = vtos %v90
    %v92 = vrcp.pop 2048.0
    %s93 = vtos %v92
    %s94 = smul.f32 %s79, %s93
    %s95 = smul.f32 %s94, 2048.0
    %s96 = smul.f32 %s95, %s94
    %s97 = ssub.f32 %s91, %s96
    %v98 = vrcp.pop 2047.0
    %s99 = vtos %v98
    %s100 = smul.f32 %s97, %s99
    %s101 = smax.f32 %s100, 0.0
    %v102 = vstv %s101
    %v103 = vrsqrt.pop %v102
    %v104 = vmul.f32 %v102, %v103
    %vm105 = vcmp.eq.f32.partialorder %v102, inf
    %v106 = vsel %vm105, %v102, %v104
    %vm107 = vcmp.eq.f32.partialorder %v102, 0.0
    %v108 = vand.u32 %v102, 2147483648
    %v109 = vsel %vm107, %v108, %v106
    %s110 = vtos %v109
    %s111 = sld [smem:[#allocation2]]
    %s112 = smul.f32 %s111, %s110
    %v113 = vstv %s112
    %v114 = vrcp.pop %v113
    %s115 = vtos %v114
    %s116 = sld [smem:[#allocation4]]
    %s117 = smul.f32 %s112, %s116
    %s118 = smul.f32 %s117, 0.5
    %s119 = sadd.f32 %s118, 0.0
    %v120 = vstv %s115
    %v121 = vmul.f32 %v68, %v120
    %v122 = vmul.f32 %v69, %v120
    %v123 = vadd.f32 %v121, 0.5
    %v124 = vadd.f32 %v122, 0.5
    %v125 = vround.ne.pseudo %v123
    %v126 = vround.ne.pseudo %v124
    %s127 = sld [smem:[#allocation6]]
    %s128 = sld [smem:[#allocation7]]
    %v129 = vstv %s127
    %v130 = vmax.f32 %v129, %v125
    %v131 = vmax.f32 %v129, %v126
    %v132 = vstv %s128
    %v133 = vmin.f32 %v132, %v130
    %v134 = vmin.f32 %v132, %v131
    %v135 = vstv %s117
    %v136 = vmul.f32 %v133, %v135
    %v137 = vmul.f32 %v134, %v135
    %s138 = sld [smem:[#allocation2 + $0x1]]
    %s139 = smul.f32 %s138, %s110
    %v140 = vstv %s139
    %v141 = vrcp.pop %v140
    %s142 = vtos %v141
    %s143 = sld [smem:[#allocation4 + $0x1]]
    %s144 = smul.f32 %s139, %s143
    %s145 = smul.f32 %s144, 0.5
    %s146 = sadd.f32 %s119, %s145
    %v147 = vstv %s142
    %v148 = vmul.f32 %v68, %v147
    %v149 = vmul.f32 %v69, %v147
    %v150 = vadd.f32 %v148, 0.5
    %v151 = vadd.f32 %v149, 0.5
    %v152 = vround.ne.pseudo %v150
    %v153 = vround.ne.pseudo %v151
    %s154 = sld [smem:[#allocation6 + $0x1]]
    %s155 = sld [smem:[#allocation7 + $0x1]]
    %v156 = vstv %s154
    %v157 = vmax.f32 %v156, %v152
    %v158 = vmax.f32 %v156, %v153
    %v159 = vstv %s155
    %v160 = vmin.f32 %v159, %v157
    %v161 = vmin.f32 %v159, %v158
    %v162 = vstv %s144
    %v163 = vmul.f32 %v160, %v162
    %v164 = vmul.f32 %v161, %v162
    %v165 = vadd.f32 %v136, %v163
    %v166 = vadd.f32 %v137, %v164
    %s167 = sld [smem:[#allocation2 + $0x2]]
    %s168 = smul.f32 %s167, %s110
    %v169 = vstv %s168
    %v170 = vrcp.pop %v169
    %s171 = vtos %v170
    %s172 = sld [smem:[#allocation4 + $0x2]]
    %s173 = smul.f32 %s168, %s172
    %s174 = smul.f32 %s173, 0.5
    %s175 = sadd.f32 %s146, %s174
    %v176 = vstv %s171
    %v177 = vmul.f32 %v68, %v176
    %v178 = vmul.f32 %v69, %v176
    %v179 = vadd.f32 %v177, 0.5
    %v180 = vadd.f32 %v178, 0.5
    %v181 = vround.ne.pseudo %v179
    %v182 = vround.ne.pseudo %v180
    %s183 = sld [smem:[#allocation6 + $0x2]]
    %s184 = sld [smem:[#allocation7 + $0x2]]
    %v185 = vstv %s183
    %v186 = vmax.f32 %v185, %v181
    %v187 = vmax.f32 %v185, %v182
    %v188 = vstv %s184
    %v189 = vmin.f32 %v188, %v186
    %v190 = vmin.f32 %v188, %v187
    %v191 = vstv %s173
    %v192 = vmul.f32 %v189, %v191
    %v193 = vmul.f32 %v190, %v191
    %v194 = vadd.f32 %v165, %v192
    %v195 = vadd.f32 %v166, %v193
    %v196 = vstv %s175
    %v197 = vsub.f32 %v194, %v196
    %v198 = vsub.f32 %v195, %v196
    %199 = vst [vmem:[%s5] sm:$0xff] %v197
    %200 = vst [vmem:[%s5 + $0x8] sm:$0xff] %v198
    // Predicated region
    $region38: #{forward.1} parent=1 // pred_check
      _
    $region39: #{forward.1} parent=1 // pred_check_branch
      %202 = sbr.rel (0) target = $region41
    $region40: #{forward.1} parent=1 // pred_region
      _
    $region41: #{forward.1} parent=1 // pred_fallthru
      _
    // Predicated region
    $region42: #{forward.1} parent=1 // pred_check
      _
    $region43: #{forward.1} parent=1 // pred_check_branch
      %204 = sbr.rel (0) target = $region45
    $region44: #{forward.1} parent=1 // pred_region
      _
    $region45: #{forward.1} parent=1 // pred_fallthru
      _
    %205 = vsyncpa [#allocation3], 1
    %206 = vsyncpa [#allocation5], 1
    %207 = vsyncpa [#allocation8], 1

</llo_original>
